<compile_context>
chip_gen: v7x
topology: tpu7x:2x2x1
jax: 0.10.0
libtpu: 0.0.40
codegen_flags: <defaults>
</compile_context>

<pallas_src>
import math
import jax
import jax.numpy as jnp
from jax.experimental import pallas as pl
from jax.experimental.pallas import tpu as pltpu


def value_net_kernel(xt_ref, w1t_ref, b1_ref, w2t_ref, b2_ref, w3_ref, b3_ref, ot_ref):
    """Transposed MLP: all tensors are (features, batch_tile); batch is in lanes."""
    xt = xt_ref[...]                                                  # (D, tb)

    # Layer 1: (H1, D) @ (D, tb) -> (H1, tb); f32 accumulation on the MXU.
    h1 = jnp.tanh(
        jnp.dot(w1t_ref[...], xt, preferred_element_type=jnp.float32)
        + b1_ref[...]                                                 # (H1, 1) broadcast
    )

    # Layer 2: (H2, H1) @ (H1, tb) -> (H2, tb).
    h2 = jnp.tanh(
        jnp.dot(w2t_ref[...], h1.astype(w2t_ref.dtype),
                preferred_element_type=jnp.float32)
        + b2_ref[...]                                                 # (H2, 1) broadcast
    )

    # Layer 3 (64 -> 1): VPU multiply + sublane reduce (keeps the MXU free and
    # yields a lane-dense (1, tb) result). b3 is a scalar in SMEM.
    out = jnp.sum(h2 * w3_ref[...], axis=0, keepdims=True) + b3_ref[0]
    ot_ref[...] = out.astype(ot_ref.dtype)                            # (1, tb)


def value_network_forward(x, params, *, tile_b=None, compute_dtype=None):
    """x: (B, state_dim) float32. params: dict of w1,b1,w2,b2,w3,b3 (w stored (in, out)).

    Returns (B, 1) float32 values, matching the PyTorch module semantics.
    """
    x = jnp.asarray(x, jnp.float32)
    B, D = x.shape
    H1 = params["w1"].shape[1]
    H2 = params["w2"].shape[1]
    cdtype = jnp.float32 if compute_dtype is None else jnp.dtype(compute_dtype)
    cbytes = jnp.dtype(cdtype).itemsize

    # ---- tile selection: lane-aligned, VMEM-budgeted, dividing B ----------------
    if tile_b is None:
        tile_b = B
        if B % 128 == 0:
            x_tile_budget = 8 * 1024 * 1024  # double-buffered x^T tile stays well under scoped VMEM
            for cand in (2048, 1024, 512, 256, 128):
                if B % cand == 0 and 2 * D * cand * cbytes <= x_tile_budget:
                    tile_b = cand
                    break
    assert B % tile_b == 0, "batch must be divisible by tile_b (pad ragged batches in the caller)"
    assert tile_b == B or tile_b % 128 == 0, "tile_b must be a multiple of 128 (lane-aligned) or == B"

    # ---- transposed operands (done once in the wrapper, not in-kernel) ----------
    xt = x.T.astype(cdtype)                                   # (D, B)   batch -> lanes
    w1t = jnp.asarray(params["w1"]).T.astype(cdtype)          # (H1, D)
    w2t = jnp.asarray(params["w2"]).T.astype(cdtype)          # (H2, H1)
    b1 = jnp.asarray(params["b1"], jnp.float32).reshape(H1, 1)
    b2 = jnp.asarray(params["b2"], jnp.float32).reshape(H2, 1)
    w3 = jnp.asarray(params["w3"], jnp.float32).reshape(H2, 1)
    b3 = jnp.asarray(params["b3"], jnp.float32).reshape(1)    # scalar -> SMEM

    # ---- explicit VMEM budget (covers v5e 16 MiB / v7x 64 MiB scoped defaults) --
    def _pad(n, m):
        return -(-n // m) * m

    lanes = _pad(tile_b, 128)
    vmem_est = (
        2 * _pad(D, 8) * lanes * cbytes                                    # x^T tile, double-buffered
        + 2 * 8 * lanes * 4                                                # (1, tile_b) f32 output
        + 2 * (_pad(H1, 8) * _pad(D, 128) + _pad(H2, 8) * _pad(H1, 128)) * cbytes  # W1^T, W2^T
        + 2 * 3 * _pad(max(H1, H2), 8) * 128 * 4                           # b1, b2, w3 columns
        + 3 * _pad(max(H1, H2), 8) * lanes * 4                             # h1/h2/out live values
    )
    vmem_limit = int(min(64 * 1024 * 1024, max(2 * vmem_est, 16 * 1024 * 1024)))

    grid = (B // tile_b,)
    out_t = pl.pallas_call(
        value_net_kernel,
        out_shape=jax.ShapeDtypeStruct((1, B), jnp.float32),
        grid_spec=pltpu.PrefetchScalarGridSpec(
            num_scalar_prefetch=0,
            grid=grid,
            in_specs=[
                pl.BlockSpec((D, tile_b), lambda i: (0, i)),        # x^T tile (batch in lanes)
                pl.BlockSpec((H1, D), lambda i: (0, 0)),            # W1^T (full)
                pl.BlockSpec((H1, 1), lambda i: (0, 0)),            # b1 column
                pl.BlockSpec((H2, H1), lambda i: (0, 0)),           # W2^T (full)
                pl.BlockSpec((H2, 1), lambda i: (0, 0)),            # b2 column
                pl.BlockSpec((H2, 1), lambda i: (0, 0)),            # w3 column (VPU reduce)
                pl.BlockSpec(memory_space=pltpu.MemorySpace.SMEM),  # b3 scalar in SMEM
            ],
            out_specs=pl.BlockSpec((1, tile_b), lambda i: (0, i)),  # lane-dense output row
        ),
        compiler_params=pltpu.CompilerParams(
            dimension_semantics=("parallel",),   # batch grid axis -> megacore shard on v7x
            vmem_limit_bytes=vmem_limit,
        ),
    )(xt, w1t, b1, w2t, b2, w3, b3)

    # (1, B) row-major -> (B, 1), matching torch's output layout.
    return out_t.reshape(B, 1)


def init_value_network_params(key, state_dim, hidden_dim=(64, 64)):
    """Deterministic init mimicking torch.nn.Linear default U(-1/sqrt(fan_in), ...)."""
    dims = [state_dim, hidden_dim[0], hidden_dim[1], 1]
    params = {}
    keys = jax.random.split(key, 6)
    for li, (fan_in, fan_out) in enumerate(zip(dims[:-1], dims[1:]), start=1):
        bound = 1.0 / math.sqrt(fan_in)
        w = jax.random.uniform(keys[2 * (li - 1)], (fan_in, fan_out),
                               minval=-bound, maxval=bound, dtype=jnp.float32)
        b = jax.random.uniform(keys[2 * (li - 1) + 1], (fan_out,),
                               minval=-bound, maxval=bound, dtype=jnp.float32)
        params[f"w{li}"] = w
        params[f"b{li}"] = b
    return params


if __name__ == "__main__":
    key = jax.random.PRNGKey(0)
    k_x, k_x2, k_p = jax.random.split(key, 3)

    state_dim = 16
    params = init_value_network_params(k_p, state_dim, hidden_dim=(64, 64))

    def ref_fwd(xv):
        h1 = jnp.tanh(xv @ params["w1"] + params["b1"])
        h2 = jnp.tanh(h1 @ params["w2"] + params["b2"])
        return h2 @ params["w3"] + params["b3"]

    # Small batch (single grid step, full-dim blocks).
    x_small = jax.random.normal(k_x, (8, state_dim), dtype=jnp.float32)
    out_small = jax.block_until_ready(value_network_forward(x_small, params))
    assert out_small.shape == (8, 1)
    assert jnp.allclose(out_small, ref_fwd(x_small), atol=1e-5, rtol=1e-5)

    # Larger batch exercising the lane-tiled grid (tile_b = 128, 2 grid steps).
    x_big = jax.random.normal(k_x2, (256, state_dim), dtype=jnp.float32)
    out_big = jax.block_until_ready(value_network_forward(x_big, params, tile_b=128))
    assert out_big.shape == (256, 1)
    assert jnp.allclose(out_big, ref_fwd(x_big), atol=1e-5, rtol=1e-5)

    # bf16 MXU-input path (f32 accumulation + f32 tanh in-kernel), looser tolerance.
    out_bf16 = jax.block_until_ready(
        value_network_forward(x_big, params, tile_b=128, compute_dtype=jnp.bfloat16))
    assert jnp.allclose(out_bf16, ref_fwd(x_big), atol=1e-1, rtol=1e-1)

    print("KERNEL_OK")
</pallas_src>

<mosaic_0001>
module attributes {stable_mosaic.version = 11 : i64} {
  func.func @value_net_kernel(%arg0: i32, %arg1: memref<16x8xf32, #tpu.memory_space<vmem>>, %arg2: memref<64x16xf32, #tpu.memory_space<vmem>>, %arg3: memref<64x1xf32, #tpu.memory_space<vmem>>, %arg4: memref<64x64xf32, #tpu.memory_space<vmem>>, %arg5: memref<64x1xf32, #tpu.memory_space<vmem>>, %arg6: memref<64x1xf32, #tpu.memory_space<vmem>>, %arg7: memref<1xf32, #tpu.memory_space<smem>>, %arg8: memref<1x8xf32, #tpu.memory_space<vmem>>) attributes {dimension_semantics = [#tpu.dimension_semantics<parallel>], iteration_bounds = array<i64: 1>, scalar_prefetch = 0 : i64, scratch_operands = 0 : i64, tpu.core_type = #tpu.core_type<tc>, window_params = [{transform_indices = @transform_0, window_bounds = array<i64: 16, 8>}, {pipeline_mode = #tpu.pipeline_mode<synchronous>, transform_indices = @transform_1, window_bounds = array<i64: 64, 16>}, {pipeline_mode = #tpu.pipeline_mode<synchronous>, transform_indices = @transform_2, window_bounds = array<i64: 64, 1>}, {pipeline_mode = #tpu.pipeline_mode<synchronous>, transform_indices = @transform_3, window_bounds = array<i64: 64, 64>}, {pipeline_mode = #tpu.pipeline_mode<synchronous>, transform_indices = @transform_4, window_bounds = array<i64: 64, 1>}, {pipeline_mode = #tpu.pipeline_mode<synchronous>, transform_indices = @transform_5, window_bounds = array<i64: 64, 1>}, {transform_indices = @transform_6, window_bounds = array<i64: 1>}, {transform_indices = @transform_7, window_bounds = array<i64: 1, 8>}]} {
    %c0 = arith.constant 0 : index
    %c0_0 = arith.constant 0 : index
    %0 = vector.load %arg1[%c0, %c0_0] : memref<16x8xf32, #tpu.memory_space<vmem>>, vector<16x8xf32>
    %c0_1 = arith.constant 0 : index
    %c0_2 = arith.constant 0 : index
    %1 = vector.load %arg2[%c0_1, %c0_2] : memref<64x16xf32, #tpu.memory_space<vmem>>, vector<64x16xf32>
    %cst = arith.constant dense<0.000000e+00> : vector<64x8xf32>
    %2 = tpu.matmul %1, %0, %cst {dimension_numbers = #tpu.dot_dimension_numbers<[1], [0], [0], [1], [0, 0, 1, 1], [], []>} : vector<64x16xf32>, vector<16x8xf32>, vector<64x8xf32> -> vector<64x8xf32>
    %c0_3 = arith.constant 0 : index
    %c0_4 = arith.constant 0 : index
    %3 = vector.load %arg3[%c0_3, %c0_4] : memref<64x1xf32, #tpu.memory_space<vmem>>, vector<64x1xf32>
    %4 = vector.broadcast %3 : vector<64x1xf32> to vector<64x8xf32>
    %5 = arith.addf %2, %4 : vector<64x8xf32>
    %6 = math.tanh %5 : vector<64x8xf32>
    %c0_5 = arith.constant 0 : index
    %c0_6 = arith.constant 0 : index
    %7 = vector.load %arg4[%c0_5, %c0_6] : memref<64x64xf32, #tpu.memory_space<vmem>>, vector<64x64xf32>
    %cst_7 = arith.constant dense<0.000000e+00> : vector<64x8xf32>
    %8 = tpu.matmul %7, %6, %cst_7 {dimension_numbers = #tpu.dot_dimension_numbers<[1], [0], [0], [1], [0, 0, 1, 1], [], []>} : vector<64x64xf32>, vector<64x8xf32>, vector<64x8xf32> -> vector<64x8xf32>
    %c0_8 = arith.constant 0 : index
    %c0_9 = arith.constant 0 : index
    %9 = vector.load %arg5[%c0_8, %c0_9] : memref<64x1xf32, #tpu.memory_space<vmem>>, vector<64x1xf32>
    %10 = vector.broadcast %9 : vector<64x1xf32> to vector<64x8xf32>
    %11 = arith.addf %8, %10 : vector<64x8xf32>
    %12 = math.tanh %11 : vector<64x8xf32>
    %c0_10 = arith.constant 0 : index
    %c0_11 = arith.constant 0 : index
    %13 = vector.load %arg6[%c0_10, %c0_11] : memref<64x1xf32, #tpu.memory_space<vmem>>, vector<64x1xf32>
    %14 = vector.broadcast %13 : vector<64x1xf32> to vector<64x8xf32>
    %15 = arith.mulf %12, %14 : vector<64x8xf32>
    %cst_12 = arith.constant dense<0.000000e+00> : vector<8xf32>
    %16 = vector.multi_reduction <add>, %15, %cst_12 [0] : vector<64x8xf32> to vector<8xf32>
    %17 = vector.shape_cast %16 : vector<8xf32> to vector<1x8xf32>
    %c0_13 = arith.constant 0 : index
    %18 = memref.load %arg7[%c0_13] : memref<1xf32, #tpu.memory_space<smem>>
    %19 = vector.broadcast %18 : f32 to vector<1x8xf32>
    %20 = arith.addf %17, %19 : vector<1x8xf32>
    %c0_14 = arith.constant 0 : index
    %c0_15 = arith.constant 0 : index
    %21 = vector.load %arg8[%c0_14, %c0_15] : memref<1x8xf32, #tpu.memory_space<vmem>>, vector<1x8xf32>
    tpu.vector_store %arg8[%c0_14, %c0_15], %20 {strides = array<i32>} : memref<1x8xf32, #tpu.memory_space<vmem>>, vector<1x8xf32>,
    return
  }
  func.func @transform_0(%arg0: i32) -> (i32, i32) {
    %c0_i32 = arith.constant 0 : i32
    %c0_i32_0 = arith.constant 0 : i32
    return %c0_i32, %arg0 : i32, i32
  }
  func.func @transform_1(%arg0: i32) -> (i32, i32) {
    %c0_i32 = arith.constant 0 : i32
    %c0_i32_0 = arith.constant 0 : i32
    %c0_i32_1 = arith.constant 0 : i32
    return %c0_i32, %c0_i32_0 : i32, i32
  }
  func.func @transform_2(%arg0: i32) -> (i32, i32) {
    %c0_i32 = arith.constant 0 : i32
    %c0_i32_0 = arith.constant 0 : i32
    %c0_i32_1 = arith.constant 0 : i32
    return %c0_i32, %c0_i32_0 : i32, i32
  }
  func.func @transform_3(%arg0: i32) -> (i32, i32) {
    %c0_i32 = arith.constant 0 : i32
    %c0_i32_0 = arith.constant 0 : i32
    %c0_i32_1 = arith.constant 0 : i32
    return %c0_i32, %c0_i32_0 : i32, i32
  }
  func.func @transform_4(%arg0: i32) -> (i32, i32) {
    %c0_i32 = arith.constant 0 : i32
    %c0_i32_0 = arith.constant 0 : i32
    %c0_i32_1 = arith.constant 0 : i32
    return %c0_i32, %c0_i32_0 : i32, i32
  }
  func.func @transform_5(%arg0: i32) -> (i32, i32) {
    %c0_i32 = arith.constant 0 : i32
    %c0_i32_0 = arith.constant 0 : i32
    %c0_i32_1 = arith.constant 0 : i32
    return %c0_i32, %c0_i32_0 : i32, i32
  }
  func.func @transform_6(%arg0: i32) -> i32 {
    %c0_i32 = arith.constant 0 : i32
    %c0_i32_0 = arith.constant 0 : i32
    return %c0_i32 : i32
  }
  func.func @transform_7(%arg0: i32) -> (i32, i32) {
    %c0_i32 = arith.constant 0 : i32
    %c0_i32_0 = arith.constant 0 : i32
    return %c0_i32, %arg0 : i32, i32
  }
}

</mosaic_0001>

<llo_original>
// kernel: tpu_custom_call.1
$region0: #{tpu_custom_call.1}
  #allocation0 [shape = 'u32[]', space=smem, size = 0x4, offset = 0x4, fixed_abs, tag = 'smem constant byte address 0x4 - core index']
  #allocation1 [shape = 'u32[144,128]{1,0:T(1,128)}', space=vmem, size = 0x12000, scoped, tag = 'internal scratch']
  #allocation2 [shape = 'f32[1]{0:T(128)S(6)}', space=smem, size = 0x200, scoped, tag = 'scoped memory for tpu_custom_call.1']
  %s0 = inlined_call_operand.vmem [shape: f32[16,8], index: 0, kind: input, shape index: {}]
  %s1 = inlined_call_operand.vmem [shape: f32[64,16], index: 1, kind: input, shape index: {}]
  %s2 = inlined_call_operand.vmem [shape: f32[64,1], index: 2, kind: input, shape index: {}]
  %s3 = inlined_call_operand.vmem [shape: f32[64,64], index: 3, kind: input, shape index: {}]
  %s4 = inlined_call_operand.vmem [shape: f32[64,1], index: 4, kind: input, shape index: {}]
  %s5 = inlined_call_operand.vmem [shape: f32[64,1], index: 5, kind: input, shape index: {}]
  %s6 = inlined_call_operand.<no memory space> [shape: f32[1], index: 6, kind: input, shape index: {}]
  %s7 = inlined_call_operand.hbm [shape: f32[1,8], index: 7, kind: output, shape index: {}]
  %s8 = sld [smem:[#allocation0]]
  $region38: #{tpu_custom_call.1} parent=0
    _
  %s10 = ssub.s32 1, %s8
  %s11 = scalar_select 0, %s10, %s8
  %12 = sst [smem:[#allocation2]] %s6
  $region1: #{tpu_custom_call.1} parent=0
    #allocation3 [shape = 'u8[512]{0}', space=vmem, size = 0x400, scoped, tag = 'output window, operand 0, single buffered']
    #allocation4 [shape = 's32[1]{0}', space=sflag, size = 0x4, scoped, tag = 'scoped memory for tpu_custom_call.1']
    %13 = vsyncpa [#allocation4], 0
    // Predicated region
    $region2: #{tpu_custom_call.1} parent=1 // pred_check
      _
    $region3: #{tpu_custom_call.1} parent=1 // pred_check_branch
      %15 = sbr.rel (0) target = $region5
    $region4: #{tpu_custom_call.1} parent=1 // pred_region
      _
    $region5: #{tpu_custom_call.1} parent=1 // pred_fallthru
      _
    // Predicated region
    $region6: #{tpu_custom_call.1} parent=1 // pred_check
      _
    $region7: #{tpu_custom_call.1} parent=1 // pred_check_branch
      %17 = sbr.rel (0) target = $region9
    $region8: #{tpu_custom_call.1} parent=1 // pred_region
      _
    $region9: #{tpu_custom_call.1} parent=1 // pred_fallthru
      _
    // Predicated region
    $region10: #{tpu_custom_call.1} parent=1 // pred_check
      _
    $region11: #{tpu_custom_call.1} parent=1 // pred_check_branch
      %19 = sbr.rel (0) target = $region13
    $region12: #{tpu_custom_call.1} parent=1 // pred_region
      _
    $region13: #{tpu_custom_call.1} parent=1 // pred_fallthru
      _
    // Predicated region
    $region14: #{tpu_custom_call.1} parent=1 // pred_check
      _
    $region15: #{tpu_custom_call.1} parent=1 // pred_check_branch
      %21 = sbr.rel (0) target = $region17
    $region16: #{tpu_custom_call.1} parent=1 // pred_region
      _
    $region17: #{tpu_custom_call.1} parent=1 // pred_fallthru
      _
    // Predicated region
    $region18: #{tpu_custom_call.1} parent=1 // pred_check
      _
    $region19: #{tpu_custom_call.1} parent=1 // pred_check_branch
      %23 = sbr.rel (0) target = $region21
    $region20: #{tpu_custom_call.1} parent=1 // pred_region
      _
    $region21: #{tpu_custom_call.1} parent=1 // pred_fallthru
      _
    // Predicated region
    $region22: #{tpu_custom_call.1} parent=1 // pred_check
      _
    $region23: #{tpu_custom_call.1} parent=1 // pred_check_branch
      %25 = sbr.rel (0) target = $region25
    $region24: #{tpu_custom_call.1} parent=1 // pred_region
      _
    $region25: #{tpu_custom_call.1} parent=1 // pred_fallthru
      _
    // Predicated region
    $region26: #{tpu_custom_call.1} parent=1 // pred_check
      _
    $region27: #{tpu_custom_call.1} parent=1 // pred_check_branch
      %27 = sbr.rel (0) target = $region29
    $region28: #{tpu_custom_call.1} parent=1 // pred_region
      _
    $region29: #{tpu_custom_call.1} parent=1 // pred_fallthru
      _
    %v28 = vld [vmem:[%s0] sm:$0xff]
    %v29 = vld [vmem:[%s0 + $0x8] sm:$0xff]
    %v30 = vld [vmem:[%s1] sm:$0xff]
    %v31 = vld [vmem:[%s1 + $0x8] sm:$0xff]
    %v32 = vld [vmem:[%s1 + $0x10] sm:$0xff]
    %v33 = vld [vmem:[%s1 + $0x18] sm:$0xff]
    %v34 = vld [vmem:[%s1 + $0x20] sm:$0xff]
    %v35 = vld [vmem:[%s1 + $0x28] sm:$0xff]
    %v36 = vld [vmem:[%s1 + $0x30] sm:$0xff]
    %v37 = vld [vmem:[%s1 + $0x38] sm:$0xff]
    %v38 = vld [vmem:[%s2] sm:$0xff]
    %v39 = vld [vmem:[%s2 + $0x8] sm:$0xff]
    %v40 = vld [vmem:[%s2 + $0x10] sm:$0xff]
    %v41 = vld [vmem:[%s2 + $0x18] sm:$0xff]
    %v42 = vld [vmem:[%s2 + $0x20] sm:$0xff]
    %v43 = vld [vmem:[%s2 + $0x28] sm:$0xff]
    %v44 = vld [vmem:[%s2 + $0x30] sm:$0xff]
    %v45 = vld [vmem:[%s2 + $0x38] sm:$0xff]
    %47 = vset.pattern.permute.xlu0 0
    %48 = vperm.xlu0 %47, %v38
    %v49 = vpop.permute.xlu0 %48
    %52 = vset.pattern.permute.xlu0 0
    %53 = vperm.xlu0 %52, %v39
    %v54 = vpop.permute.xlu0 %53
    %57 = vset.pattern.permute.xlu0 0
    %58 = vperm.xlu0 %57, %v40
    %v59 = vpop.permute.xlu0 %58
    %62 = vset.pattern.permute.xlu0 0
    %63 = vperm.xlu0 %62, %v41
    %v64 = vpop.permute.xlu0 %63
    %67 = vset.pattern.permute.xlu0 0
    %68 = vperm.xlu0 %67, %v42
    %v69 = vpop.permute.xlu0 %68
    %72 = vset.pattern.permute.xlu0 0
    %73 = vperm.xlu0 %72, %v43
    %v74 = vpop.permute.xlu0 %73
    %77 = vset.pattern.permute.xlu0 0
    %78 = vperm.xlu0 %77, %v44
    %v79 = vpop.permute.xlu0 %78
    %82 = vset.pattern.permute.xlu0 0
    %83 = vperm.xlu0 %82, %v45
    %v84 = vpop.permute.xlu0 %83
    %vm86 = vcmask 130048
    %v88 = vsel %vm86, %v30, 0
    %v91 = vsel %vm86, %v31, 0
    %v94 = vsel %vm86, %v32, 0
    %v97 = vsel %vm86, %v33, 0
    %v100 = vsel %vm86, %v34, 0
    %v103 = vsel %vm86, %v35, 0
    %v106 = vsel %vm86, %v36, 0
    %v109 = vsel %vm86, %v37, 0
    %111 = vmatprep.subr.mxu0 0.0
    %112 = vmatpush1.msra.mxu0 %v28
    %113 = vmatprep.subr.mxu0 0.0
    %114 = vmatpush1.msra.mxu0 %v29
    %115 = vmatprep.subr.mxu0 0.0
    %116 = vmatpush1.msra.mxu0 0.0
    %117 = vmatprep.subr.mxu0 0.0
    %118 = vmatpush1.msra.mxu0 0.0
    %119 = vmatprep.subr.mxu0 0.0
    %120 = vmatpush1.msra.mxu0 0.0
    %121 = vmatprep.subr.mxu0 0.0
    %122 = vmatpush1.msra.mxu0 0.0
    %123 = vmatprep.subr.mxu0 0.0
    %124 = vmatpush1.msra.mxu0 0.0
    %125 = vmatprep.subr.mxu0 0.0
    %126 = vmatpush1.msra.mxu0 0.0
    %127 = vmatprep.subr.mxu0 0.0
    %128 = vmatpush1.msra.mxu0 0.0
    %129 = vmatprep.subr.mxu0 0.0
    %130 = vmatpush1.msra.mxu0 0.0
    %131 = vmatprep.subr.mxu0 0.0
    %132 = vmatpush1.msra.mxu0 0.0
    %133 = vmatprep.subr.mxu0 0.0
    %134 = vmatpush1.msra.mxu0 0.0
    %135 = vmatprep.subr.mxu0 0.0
    %136 = vmatpush1.msra.mxu0 0.0
    %137 = vmatprep.subr.mxu0 0.0
    %138 = vmatpush1.msra.mxu0 0.0
    %139 = vmatprep.subr.mxu0 0.0
    %140 = vmatpush1.msra.mxu0 0.0
    %141 = vmatprep.subr.mxu0 0.0
    %142 = vmatpush1.msra.mxu0 0.0
    %143 = vmatprep.subr.mxu0 0.0
    %144 = vmatpush1.msra.mxu0 0.0
    %145 = vmatprep.subr.mxu0 0.0
    %146 = vmatpush1.msra.mxu0 0.0
    %147 = vmatprep.subr.mxu0 0.0
    %148 = vmatpush1.msra.mxu0 0.0
    %149 = vmatprep.subr.mxu0 0.0
    %150 = vmatpush1.msra.mxu0 0.0
    %151 = vmatprep.subr.mxu0 0.0
    %152 = vmatpush1.msra.mxu0 0.0
    %153 = vmatprep.subr.mxu0 0.0
    %154 = vmatpush1.msra.mxu0 0.0
    %155 = vmatprep.subr.mxu0 0.0
    %156 = vmatpush1.msra.mxu0 0.0
    %157 = vmatprep.subr.mxu0 0.0
    %158 = vmatpush1.msra.mxu0 0.0
    %159 = vmatprep.subr.mxu0 0.0
    %160 = vmatpush1.msra.mxu0 0.0
    %161 = vmatprep.subr.mxu0 0.0
    %162 = vmatpush1.msra.mxu0 0.0
    %163 = vmatprep.subr.mxu0 0.0
    %164 = vmatpush1.msra.mxu0 0.0
    %165 = vmatprep.subr.mxu0 0.0
    %166 = vmatpush1.msra.mxu0 0.0
    %167 = vmatprep.subr.mxu0 0.0
    %168 = vmatpush1.msra.mxu0 0.0
    %169 = vmatprep.subr.mxu0 0.0
    %170 = vmatpush1.msra.mxu0 0.0
    %171 = vmatprep.subr.mxu0 0.0
    %172 = vmatpush1.msra.mxu0 0.0
    %173 = vmatprep.subr.mxu0 0.0
    %174 = vmatpush1.msra.mxu0 0.0
    %175 = vmatprep.mubr.f32.mxu0 0.0
    %176 = vmatmul.mubr.f32.gmra.mrb[0].mxu0 %v88
    %v177 = vpop.f32.mrb[0].mxu0
    %v178 = vadd.f32 %v49, %v177
    %v179 = vpop.f32.mrb[0].mxu0
    %180 = vmatprep.mubr.f32.mxu0 0.0
    %181 = vmatmul.mubr.f32.gmra.mrb[0].mxu0 %v91
    %v182 = vpop.f32.mrb[0].mxu0
    %v183 = vadd.f32 %v54, %v182
    %v184 = vpop.f32.mrb[0].mxu0
    %185 = vmatprep.mubr.f32.mxu0 0.0
    %186 = vmatmul.mubr.f32.gmra.mrb[0].mxu0 %v94
    %v187 = vpop.f32.mrb[0].mxu0
    %v188 = vadd.f32 %v59, %v187
    %v189 = vpop.f32.mrb[0].mxu0
    %190 = vmatprep.mubr.f32.mxu0 0.0
    %191 = vmatmul.mubr.f32.gmra.mrb[0].mxu0 %v97
    %v192 = vpop.f32.mrb[0].mxu0
    %v193 = vadd.f32 %v64, %v192
    %v194 = vpop.f32.mrb[0].mxu0
    %195 = vmatprep.mubr.f32.mxu0 0.0
    %196 = vmatmul.mubr.f32.gmra.mrb[0].mxu0 %v100
    %v197 = vpop.f32.mrb[0].mxu0
    %v198 = vadd.f32 %v69, %v197
    %v199 = vpop.f32.mrb[0].mxu0
    %200 = vmatprep.mubr.f32.mxu0 0.0
    %201 = vmatmul.mubr.f32.gmra.mrb[0].mxu0 %v103
    %v202 = vpop.f32.mrb[0].mxu0
    %v203 = vadd.f32 %v74, %v202
    %v204 = vpop.f32.mrb[0].mxu0
    %205 = vmatprep.mubr.f32.mxu0 0.0
    %206 = vmatmul.mubr.f32.gmra.mrb[0].mxu0 %v106
    %v207 = vpop.f32.mrb[0].mxu0
    %v208 = vadd.f32 %v79, %v207
    %v209 = vpop.f32.mrb[0].mxu0
    %210 = vmatprep.mubr.f32.mxu0 0.0
    %211 = vmatmul.mubr.f32.gmra.mrb[0].mxu0 %v109
    %v212 = vpop.f32.mrb[0].mxu0
    %v213 = vadd.f32 %v84, %v212
    %v214 = vpop.f32.mrb[0].mxu0
    %215 = vdwg.mxu0
    %v216 = vtanh.pop %v178
    %v217 = vtanh.pop %v183
    %v218 = vtanh.pop %v188
    %v219 = vtanh.pop %v193
    %v220 = vtanh.pop %v198
    %v221 = vtanh.pop %v203
    %v222 = vtanh.pop %v208
    %v223 = vtanh.pop %v213
    %v224 = vld [vmem:[%s3] sm:$0xff]
    %v225 = vld [vmem:[%s3 + $0x8] sm:$0xff]
    %v226 = vld [vmem:[%s3 + $0x10] sm:$0xff]
    %v227 = vld [vmem:[%s3 + $0x18] sm:$0xff]
    %v228 = vld [vmem:[%s3 + $0x20] sm:$0xff]
    %v229 = vld [vmem:[%s3 + $0x28] sm:$0xff]
    %v230 = vld [vmem:[%s3 + $0x30] sm:$0xff]
    %v231 = vld [vmem:[%s3 + $0x38] sm:$0xff]
    %v232 = vld [vmem:[%s4] sm:$0xff]
    %v233 = vld [vmem:[%s4 + $0x8] sm:$0xff]
    %v234 = vld [vmem:[%s4 + $0x10] sm:$0xff]
    %v235 = vld [vmem:[%s4 + $0x18] sm:$0xff]
    %v236 = vld [vmem:[%s4 + $0x20] sm:$0xff]
    %v237 = vld [vmem:[%s4 + $0x28] sm:$0xff]
    %v238 = vld [vmem:[%s4 + $0x30] sm:$0xff]
    %v239 = vld [vmem:[%s4 + $0x38] sm:$0xff]
    %241 = vset.pattern.permute.xlu0 0
    %242 = vperm.xlu0 %241, %v232
    %v243 = vpop.permute.xlu0 %242
    %246 = vset.pattern.permute.xlu0 0
    %247 = vperm.xlu0 %246, %v233
    %v248 = vpop.permute.xlu0 %247
    %251 = vset.pattern.permute.xlu0 0
    %252 = vperm.xlu0 %251, %v234
    %v253 = vpop.permute.xlu0 %252
    %256 = vset.pattern.permute.xlu0 0
    %257 = vperm.xlu0 %256, %v235
    %v258 = vpop.permute.xlu0 %257
    %261 = vset.pattern.permute.xlu0 0
    %262 = vperm.xlu0 %261, %v236
    %v263 = vpop.permute.xlu0 %262
    %266 = vset.pattern.permute.xlu0 0
    %267 = vperm.xlu0 %266, %v237
    %v268 = vpop.permute.xlu0 %267
    %271 = vset.pattern.permute.xlu0 0
    %272 = vperm.xlu0 %271, %v238
    %v273 = vpop.permute.xlu0 %272
    %276 = vset.pattern.permute.xlu0 0
    %277 = vperm.xlu0 %276, %v239
    %v278 = vpop.permute.xlu0 %277
    %vm280 = vcmask 523264
    %v282 = vsel %vm280, %v224, 0
    %v285 = vsel %vm280, %v225, 0
    %v288 = vsel %vm280, %v226, 0
    %v291 = vsel %vm280, %v227, 0
    %v294 = vsel %vm280, %v228, 0
    %v297 = vsel %vm280, %v229, 0
    %v300 = vsel %vm280, %v230, 0
    %v303 = vsel %vm280, %v231, 0
    %305 = vmatprep.subr.mxu0 0.0
    %306 = vmatpush1.msra.mxu0 %v216
    %307 = vmatprep.subr.mxu0 0.0
    %308 = vmatpush1.msra.mxu0 %v217
    %309 = vmatprep.subr.mxu0 0.0
    %310 = vmatpush1.msra.mxu0 %v218
    %311 = vmatprep.subr.mxu0 0.0
    %312 = vmatpush1.msra.mxu0 %v219
    %313 = vmatprep.subr.mxu0 0.0
    %314 = vmatpush1.msra.mxu0 %v220
    %315 = vmatprep.subr.mxu0 0.0
    %316 = vmatpush1.msra.mxu0 %v221
    %317 = vmatprep.subr.mxu0 0.0
    %318 = vmatpush1.msra.mxu0 %v222
    %319 = vmatprep.subr.mxu0 0.0
    %320 = vmatpush1.msra.mxu0 %v223
    %321 = vmatprep.subr.mxu0 0.0
    %322 = vmatpush1.msra.mxu0 0.0
    %323 = vmatprep.subr.mxu0 0.0
    %324 = vmatpush1.msra.mxu0 0.0
    %325 = vmatprep.subr.mxu0 0.0
    %326 = vmatpush1.msra.mxu0 0.0
    %327 = vmatprep.subr.mxu0 0.0
    %328 = vmatpush1.msra.mxu0 0.0
    %329 = vmatprep.subr.mxu0 0.0
    %330 = vmatpush1.msra.mxu0 0.0
    %331 = vmatprep.subr.mxu0 0.0
    %332 = vmatpush1.msra.mxu0 0.0
    %333 = vmatprep.subr.mxu0 0.0
    %334 = vmatpush1.msra.mxu0 0.0
    %335 = vmatprep.subr.mxu0 0.0
    %336 = vmatpush1.msra.mxu0 0.0
    %337 = vmatprep.subr.mxu0 0.0
    %338 = vmatpush1.msra.mxu0 0.0
    %339 = vmatprep.subr.mxu0 0.0
    %340 = vmatpush1.msra.mxu0 0.0
    %341 = vmatprep.subr.mxu0 0.0
    %342 = vmatpush1.msra.mxu0 0.0
    %343 = vmatprep.subr.mxu0 0.0
    %344 = vmatpush1.msra.mxu0 0.0
    %345 = vmatprep.subr.mxu0 0.0
    %346 = vmatpush1.msra.mxu0 0.0
    %347 = vmatprep.subr.mxu0 0.0
    %348 = vmatpush1.msra.mxu0 0.0
    %349 = vmatprep.subr.mxu0 0.0
    %350 = vmatpush1.msra.mxu0 0.0
    %351 = vmatprep.subr.mxu0 0.0
    %352 = vmatpush1.msra.mxu0 0.0
    %353 = vmatprep.subr.mxu0 0.0
    %354 = vmatpush1.msra.mxu0 0.0
    %355 = vmatprep.subr.mxu0 0.0
    %356 = vmatpush1.msra.mxu0 0.0
    %357 = vmatprep.subr.mxu0 0.0
    %358 = vmatpush1.msra.mxu0 0.0
    %359 = vmatprep.subr.mxu0 0.0
    %360 = vmatpush1.msra.mxu0 0.0
    %361 = vmatprep.subr.mxu0 0.0
    %362 = vmatpush1.msra.mxu0 0.0
    %363 = vmatprep.subr.mxu0 0.0
    %364 = vmatpush1.msra.mxu0 0.0
    %365 = vmatprep.subr.mxu0 0.0
    %366 = vmatpush1.msra.mxu0 0.0
    %367 = vmatprep.subr.mxu0 0.0
    %368 = vmatpush1.msra.mxu0 0.0
    %369 = vmatprep.mubr.f32.mxu0 0.0
    %370 = vmatmul.mubr.f32.gmra.mrb[0].mxu0 %v282
    %v371 = vpop.f32.mrb[0].mxu0
    %v372 = vadd.f32 %v243, %v371
    %v373 = vpop.f32.mrb[0].mxu0
    %374 = vmatprep.mubr.f32.mxu0 0.0
    %375 = vmatmul.mubr.f32.gmra.mrb[0].mxu0 %v285
    %v376 = vpop.f32.mrb[0].mxu0
    %v377 = vadd.f32 %v248, %v376
    %v378 = vpop.f32.mrb[0].mxu0
    %379 = vmatprep.mubr.f32.mxu0 0.0
    %380 = vmatmul.mubr.f32.gmra.mrb[0].mxu0 %v288
    %v381 = vpop.f32.mrb[0].mxu0
    %v382 = vadd.f32 %v253, %v381
    %v383 = vpop.f32.mrb[0].mxu0
    %384 = vmatprep.mubr.f32.mxu0 0.0
    %385 = vmatmul.mubr.f32.gmra.mrb[0].mxu0 %v291
    %v386 = vpop.f32.mrb[0].mxu0
    %v387 = vadd.f32 %v258, %v386
    %v388 = vpop.f32.mrb[0].mxu0
    %389 = vmatprep.mubr.f32.mxu0 0.0
    %390 = vmatmul.mubr.f32.gmra.mrb[0].mxu0 %v294
    %v391 = vpop.f32.mrb[0].mxu0
    %v392 = vadd.f32 %v263, %v391
    %v393 = vpop.f32.mrb[0].mxu0
    %394 = vmatprep.mubr.f32.mxu0 0.0
    %395 = vmatmul.mubr.f32.gmra.mrb[0].mxu0 %v297
    %v396 = vpop.f32.mrb[0].mxu0
    %v397 = vadd.f32 %v268, %v396
    %v398 = vpop.f32.mrb[0].mxu0
    %399 = vmatprep.mubr.f32.mxu0 0.0
    %400 = vmatmul.mubr.f32.gmra.mrb[0].mxu0 %v300
    %v401 = vpop.f32.mrb[0].mxu0
    %v402 = vadd.f32 %v273, %v401
    %v403 = vpop.f32.mrb[0].mxu0
    %404 = vmatprep.mubr.f32.mxu0 0.0
    %405 = vmatmul.mubr.f32.gmra.mrb[0].mxu0 %v303
    %v406 = vpop.f32.mrb[0].mxu0
    %v407 = vadd.f32 %v278, %v406
    %v408 = vpop.f32.mrb[0].mxu0
    %409 = vdwg.mxu0
    %v410 = vtanh.pop %v372
    %v411 = vtanh.pop %v377
    %v412 = vtanh.pop %v382
    %v413 = vtanh.pop %v387
    %v414 = vtanh.pop %v392
    %v415 = vtanh.pop %v397
    %v416 = vtanh.pop %v402
    %v417 = vtanh.pop %v407
    %v418 = vld [vmem:[%s5] sm:$0xff]
    %v419 = vld [vmem:[%s5 + $0x8] sm:$0xff]
    %v420 = vld [vmem:[%s5 + $0x10] sm:$0xff]
    %v421 = vld [vmem:[%s5 + $0x18] sm:$0xff]
    %v422 = vld [vmem:[%s5 + $0x20] sm:$0xff]
    %v423 = vld [vmem:[%s5 + $0x28] sm:$0xff]
    %v424 = vld [vmem:[%s5 + $0x30] sm:$0xff]
    %v425 = vld [vmem:[%s5 + $0x38] sm:$0xff]
    %427 = vset.pattern.permute.xlu0 0
    %428 = vperm.xlu0 %427, %v418
    %v429 = vpop.permute.xlu0 %428
    %432 = vset.pattern.permute.xlu0 0
    %433 = vperm.xlu0 %432, %v419
    %v434 = vpop.permute.xlu0 %433
    %437 = vset.pattern.permute.xlu0 0
    %438 = vperm.xlu0 %437, %v420
    %v439 = vpop.permute.xlu0 %438
    %442 = vset.pattern.permute.xlu0 0
    %443 = vperm.xlu0 %442, %v421
    %v444 = vpop.permute.xlu0 %443
    %447 = vset.pattern.permute.xlu0 0
    %448 = vperm.xlu0 %447, %v422
    %v449 = vpop.permute.xlu0 %448
    %452 = vset.pattern.permute.xlu0 0
    %453 = vperm.xlu0 %452, %v423
    %v454 = vpop.permute.xlu0 %453
    %457 = vset.pattern.permute.xlu0 0
    %458 = vperm.xlu0 %457, %v424
    %v459 = vpop.permute.xlu0 %458
    %462 = vset.pattern.permute.xlu0 0
    %463 = vperm.xlu0 %462, %v425
    %v464 = vpop.permute.xlu0 %463
    %v466 = vmul.f32 %v410, %v429
    %v467 = vmul.f32 %v411, %v434
    %v468 = vmul.f32 %v412, %v439
    %v469 = vmul.f32 %v413, %v444
    %v470 = vmul.f32 %v414, %v449
    %v471 = vmul.f32 %v415, %v454
    %v472 = vmul.f32 %v416, %v459
    %v473 = vmul.f32 %v417, %v464
    %vm474 = vcmask 64512
    %v475 = vsel %vm474, %v466, 0.0
    %v476 = vsel %vm474, %v467, 0.0
    %v477 = vadd.f32 %v475, %v476
    %v478 = vsel %vm474, %v468, 0.0
    %v479 = vadd.f32 %v477, %v478
    %v480 = vsel %vm474, %v469, 0.0
    %v481 = vadd.f32 %v479, %v480
    %v482 = vsel %vm474, %v470, 0.0
    %v483 = vadd.f32 %v481, %v482
    %v484 = vsel %vm474, %v471, 0.0
    %v485 = vadd.f32 %v483, %v484
    %v486 = vsel %vm474, %v472, 0.0
    %v487 = vadd.f32 %v485, %v486
    %v488 = vsel %vm474, %v473, 0.0
    %v489 = vadd.f32 %v487, %v488
    %v490 = vrot.slane %v489, 4
    %v491 = vadd.f32 %v489, %v490
    %v492 = vrot.slane %v491, 2
    %v493 = vadd.f32 %v491, %v492
    %v494 = vrot.slane %v493, 1
    %v495 = vadd.f32 %v493, %v494
    %s496 = sld [smem:[#allocation2]]
    %v497 = vstv %s496
    %v498 = vadd.f32 %v495, %v497
    %vm499 = vcmask 57344
    %500 = vst.msk [vmem:[#allocation3] sm:$0x1] %vm499, %v498
    // Predicated region
    $region30: #{tpu_custom_call.1} parent=1 // pred_check
      _
    $region31: #{tpu_custom_call.1} parent=1 // pred_check_branch
      %502 = sbr.rel (0) target = $region33
    $region32: #{tpu_custom_call.1} parent=1 // pred_region
      %s504 = ssub.s32 16, 16
      %505 = vsyncadd [#allocation4], %s504
      %s507 = sshll.u32 [#allocation3], 4
      %s508 = int_to_ptr.vmem [resolvable:$true] %s507
      %510 = dma.vmem_to_hbm [thread:$0]  %s508, 16, %s7, [#allocation4]
    $region33: #{tpu_custom_call.1} parent=1 // pred_fallthru
      _
    // Predicated region
    $region34: #{tpu_custom_call.1} parent=1 // pred_check
      _
    $region35: #{tpu_custom_call.1} parent=1 // pred_check_branch
      %512 = sbr.rel (0) target = $region37
    $region36: #{tpu_custom_call.1} parent=1 // pred_region
      %513 = dma.done [#allocation4], 16
    $region37: #{tpu_custom_call.1} parent=1 // pred_fallthru
      _
    %514 = vsyncpa [#allocation4], 1

</llo_original>
